<compile_context>
chip_gen: v7x
topology: tpu7x:2x2x1
jax: 0.10.0
libtpu: 0.0.40
codegen_flags: <defaults>
</compile_context>

<pallas_src>
import functools

import jax
import jax.numpy as jnp
from jax.experimental import pallas as pl
from jax.experimental.pallas import tpu as pltpu

PAD_ID = 0
_SENTINEL = -1


def _round_up(x, m):
    return (x + m - 1) // m * m


def _cdiv(a, b):
    return -(-a // b)


def _max_entropy_partials_kernel(x_ref, t_ref, out_ref,
                                 nll_acc, ent_acc, w_acc, *,
                                 c_total, ragged_c):
    j = pl.program_id(1)                       # C-tile index (innermost reduction axis)
    x = x_ref[...].astype(jnp.float32)         # (tn, tc); bf16 streams over HBM, upcast here
    t = t_ref[...]                             # (tn, 1) int32; -1 marks PAD / ragged-N rows
    tn, tc = x.shape

    row_valid = t >= 0                                           # (tn, 1) bool
    lane = jax.lax.broadcasted_iota(jnp.int32, (tn, tc), 1)      # local column ids 0..tc-1

    if ragged_c:
        # Ragged C edge: out-of-range columns hold undefined fill -> mask via select
        # BEFORE any sum (select does not propagate NaN/inf from the unselected branch).
        valid = (lane < (c_total - j * tc)) & row_valid
    else:
        valid = row_valid
    xm = jnp.where(valid, x, 0.0)              # masked log-probs, reused for nll + entropy

    # One-hot match in LOCAL column coordinates; sentinel targets never match.
    hit = lane == (t - j * tc)
    nll_terms = jnp.where(hit, xm, 0.0)
    ent_terms = jnp.exp(xm) * xm               # masked entries: exp(0) * 0 == 0

    # Lane-wide partial sums: pure vector adds + per-lane sublane reduce, no scalar tail.
    nll_p = jnp.sum(nll_terms, axis=0, keepdims=True)            # (1, tc)
    ent_p = jnp.sum(ent_terms, axis=0, keepdims=True)            # (1, tc)

    @pl.when(j == 0)
    def _():
        nll_acc[...] = jnp.zeros_like(nll_acc)
        ent_acc[...] = jnp.zeros_like(ent_acc)
        # Non-pad row count is identical for every C tile; compute it exactly once.
        w_acc[...] = jnp.sum(row_valid.astype(jnp.float32), keepdims=True)

    nll_acc[...] += nll_p
    ent_acc[...] += ent_p

    @pl.when(j == pl.num_programs(1) - 1)
    def _():
        nll_s = jnp.sum(nll_acc[...])
        ent_s = jnp.sum(ent_acc[...])
        w_s = jnp.sum(w_acc[...])
        # Lane-dense (8,128) partial row: lane0=nll_num, lane1=w_sum, lane2=ent_sum.
        lane8 = jax.lax.broadcasted_iota(jnp.int32, (8, 128), 1)
        out_ref[...] = jnp.where(lane8 == 0, nll_s,
                       jnp.where(lane8 == 1, w_s,
                       jnp.where(lane8 == 2, ent_s, 0.0)))


def max_entropy_sequence_loss(inputs, targets, alpha, *,
                              tile_n=512, tile_c=None,
                              vmem_limit_bytes=48 * 1024 * 1024):
    """inputs: [N, C] float log-probs; targets: [N] int. Returns scalar f32 loss."""
    n_orig, c_orig = inputs.shape
    if not jnp.issubdtype(inputs.dtype, jnp.floating):
        inputs = inputs.astype(jnp.float32)
    itemsize = jnp.dtype(inputs.dtype).itemsize
    if tile_c is None:
        tile_c = 4096 if itemsize <= 2 else 2048     # keep >= ~4 MiB per grid step
    tile_n = max(8, (tile_n // 8) * 8)
    tile_c = max(128, (tile_c // 128) * 128)

    targets = targets.astype(jnp.int32)

    # Only truly tiny arrays get a one-off pad (negligible copy) so that block dims fit
    # inside the array; realistic [N, vocab] inputs stream unpadded -> no extra HBM pass.
    n, c = n_orig, c_orig
    if n < 8 or c < 128:
        inputs = jnp.pad(inputs, ((0, max(8 - n, 0)), (0, max(128 - c, 0))))
        n, c = inputs.shape

    # Tile sizes: multiples of (8,128), never larger than the array, and at least two
    # N tiles whenever N allows it (megacore occupancy on v7x; harmless elsewhere).
    tn = min(tile_n, (n // 8) * 8)
    if _cdiv(n, tn) < 2 and n > 8:
        tn = _round_up(_cdiv(n, 2), 8)
    tc = min(tile_c, (c // 128) * 128)
    num_n = _cdiv(n, tn)
    num_c = _cdiv(c, tc)
    n_pad = num_n * tn

    # PAD rows (and ragged-N padding rows) get a sentinel target so the kernel's masks
    # collapse to a single `t >= 0` test.  This touches only the tiny [N] array.
    t_eff = jnp.where(targets == PAD_ID, _SENTINEL, targets)
    if n_pad != n_orig:
        t_eff = jnp.pad(t_eff, (0, n_pad - n_orig), constant_values=_SENTINEL)
    targets2d = t_eff.reshape(n_pad, 1)

    cost = pl.CostEstimate(
        flops=8 * n * c,
        transcendentals=n * c,
        bytes_accessed=n * c * itemsize + n_pad * 4 + num_n * 8 * 128 * 4,
    )

    partials = pl.pallas_call(
        functools.partial(_max_entropy_partials_kernel,
                          c_total=c, ragged_c=(c % tc != 0)),
        out_shape=jax.ShapeDtypeStruct((num_n * 8, 128), jnp.float32),
        grid=(num_n, num_c),
        in_specs=[
            pl.BlockSpec((tn, tc), lambda i, j: (i, j)),
            pl.BlockSpec((tn, 1), lambda i, j: (i, 0)),
        ],
        out_specs=pl.BlockSpec((8, 128), lambda i, j: (i, 0)),
        scratch_shapes=[
            pltpu.VMEM((1, tc), jnp.float32),   # nll numerator (per lane column)
            pltpu.VMEM((1, tc), jnp.float32),   # entropy numerator (per lane column)
            pltpu.VMEM((1, 1), jnp.float32),    # non-pad weight count
        ],
        compiler_params=pltpu.CompilerParams(
            dimension_semantics=("parallel", "arbitrary"),
            vmem_limit_bytes=vmem_limit_bytes,
        ),
        cost_estimate=cost,
    )(inputs, targets2d)

    # Tiny final combine on the per-N-tile partials (divide exactly once, in f32).
    per_tile = partials.reshape(num_n, 8, 128)[:, 0, :]   # (num_n, 128)
    totals = jnp.sum(per_tile, axis=0)
    nll = -totals[0] / totals[1]
    ent = totals[2] / jnp.float32(n_orig)                  # denominator = original N
    return nll + jnp.float32(alpha) * ent


def _reference_loss(inputs, targets, alpha):
    # Pure-JAX reference mirroring the PyTorch forward.
    n, _ = inputs.shape
    x = inputs.astype(jnp.float32)
    gathered = jnp.take_along_axis(x, targets[:, None], axis=1)[:, 0]
    w = (targets != PAD_ID).astype(jnp.float32)
    nll = -jnp.sum(gathered * w) / jnp.sum(w)
    masked = jnp.where((targets == PAD_ID)[:, None], 0.0, x)
    ent = jnp.sum(jnp.exp(masked) * masked) / n
    return nll + alpha * ent


if __name__ == "__main__":
    key = jax.random.PRNGKey(0)
    k1, k2, k3, k4, k5, k6 = jax.random.split(key, 6)
    ALPHA = 0.1

    # Case 1: small single-tile shapes consistent with the module ([N, C] / [N]).
    N1, V1 = 8, 32
    logits1 = jax.random.normal(k1, (N1, V1), dtype=jnp.float32)
    inputs1 = jax.nn.log_softmax(logits1, axis=-1)        # NLLLoss expects log-probs
    targets1 = jax.random.randint(k2, (N1,), 0, V1, dtype=jnp.int32)
    loss1 = jax.block_until_ready(max_entropy_sequence_loss(inputs1, targets1, ALPHA))
    ref1 = _reference_loss(inputs1, targets1, ALPHA)
    assert jnp.allclose(loss1, ref1, atol=1e-4, rtol=1e-4), (loss1, ref1)

    # Case 2: multi-tile grid with ragged N and C edges (no wrapper pad), forced small tiles.
    N2, V2 = 20, 300
    logits2 = jax.random.normal(k3, (N2, V2), dtype=jnp.float32)
    inputs2 = jax.nn.log_softmax(logits2, axis=-1)
    targets2 = jax.random.randint(k4, (N2,), 0, V2, dtype=jnp.int32)
    loss2 = jax.block_until_ready(
        max_entropy_sequence_loss(inputs2, targets2, ALPHA, tile_n=8, tile_c=128))
    ref2 = _reference_loss(inputs2, targets2, ALPHA)
    assert jnp.allclose(loss2, ref2, atol=1e-4, rtol=1e-4), (loss2, ref2)

    # Case 3: bf16 streaming path + default tiles + megacore N split + ragged C, incl. PAD rows.
    N3, V3 = 160, 1000
    logits3 = jax.random.normal(k5, (N3, V3), dtype=jnp.float32)
    inputs3 = jax.nn.log_softmax(logits3, axis=-1).astype(jnp.bfloat16)
    targets3 = jax.random.randint(k6, (N3,), 0, V3, dtype=jnp.int32)
    targets3 = targets3.at[::7].set(PAD_ID)               # sprinkle PAD rows
    loss3 = jax.block_until_ready(max_entropy_sequence_loss(inputs3, targets3, ALPHA))
    ref3 = _reference_loss(inputs3, targets3, ALPHA)
    assert jnp.allclose(loss3, ref3, atol=5e-4, rtol=1e-3), (loss3, ref3)

    print("KERNEL_OK")
</pallas_src>

<mosaic_0001>
module attributes {stable_mosaic.version = 11 : i64} {
  func.func @_max_entropy_partials_kernel(%arg0: i32, %arg1: i32, %arg2: memref<8x128xf32, #tpu.memory_space<vmem>>, %arg3: memref<8x1xi32, #tpu.memory_space<vmem>>, %arg4: memref<8x128xf32, #tpu.memory_space<vmem>>, %arg5: memref<1x128xf32, #tpu.memory_space<vmem>>, %arg6: memref<1x128xf32, #tpu.memory_space<vmem>>, %arg7: memref<1x1xf32, #tpu.memory_space<vmem>>) attributes {dimension_semantics = [#tpu.dimension_semantics<parallel>, #tpu.dimension_semantics<arbitrary>], iteration_bounds = array<i64: 1, 1>, scalar_prefetch = 0 : i64, scratch_operands = 3 : i64, tpu.core_type = #tpu.core_type<tc>, window_params = [{transform_indices = @transform_0, window_bounds = array<i64: 8, 128>}, {transform_indices = @transform_1, window_bounds = array<i64: 8, 1>}, {transform_indices = @transform_2, window_bounds = array<i64: 8, 128>}]} {
    %c0 = arith.constant 0 : index
    %c0_0 = arith.constant 0 : index
    %0 = vector.load %arg2[%c0, %c0_0] : memref<8x128xf32, #tpu.memory_space<vmem>>, vector<8x128xf32>
    %c0_1 = arith.constant 0 : index
    %c0_2 = arith.constant 0 : index
    %1 = vector.load %arg3[%c0_1, %c0_2] : memref<8x1xi32, #tpu.memory_space<vmem>>, vector<8x1xi32>
    %c0_i32 = arith.constant 0 : i32
    %2 = vector.broadcast %c0_i32 : i32 to vector<8x1xi32>
    %3 = arith.cmpi sge, %1, %2 : vector<8x1xi32>
    %4 = tpu.iota {dimensions = array<i32: 1>} : vector<8x128xi32>
    %cst = arith.constant 0.000000e+00 : f32
    %5 = vector.shape_cast %3 : vector<8x1xi1> to vector<8x1xi1>
    %6 = vector.broadcast %5 : vector<8x1xi1> to vector<8x128xi1>
    %7 = vector.broadcast %cst : f32 to vector<8x128xf32>
    %8 = arith.select %6, %0, %7 : vector<8x128xi1>, vector<8x128xf32>
    %c128_i32 = arith.constant 128 : i32
    %9 = arith.muli %arg1, %c128_i32 : i32
    %10 = vector.broadcast %9 : i32 to vector<8x1xi32>
    %11 = arith.subi %1, %10 : vector<8x1xi32>
    %12 = vector.broadcast %11 : vector<8x1xi32> to vector<8x128xi32>
    %13 = arith.cmpi eq, %4, %12 : vector<8x128xi32>
    %cst_3 = arith.constant 0.000000e+00 : f32
    %14 = vector.broadcast %cst_3 : f32 to vector<8x128xf32>
    %15 = arith.select %13, %8, %14 : vector<8x128xi1>, vector<8x128xf32>
    %16 = math.exp %8 : vector<8x128xf32>
    %17 = arith.mulf %16, %8 : vector<8x128xf32>
    %cst_4 = arith.constant dense<0.000000e+00> : vector<128xf32>
    %18 = vector.multi_reduction <add>, %15, %cst_4 [0] : vector<8x128xf32> to vector<128xf32>
    %19 = vector.shape_cast %18 : vector<128xf32> to vector<1x128xf32>
    %cst_5 = arith.constant dense<0.000000e+00> : vector<128xf32>
    %20 = vector.multi_reduction <add>, %17, %cst_5 [0] : vector<8x128xf32> to vector<128xf32>
    %21 = vector.shape_cast %20 : vector<128xf32> to vector<1x128xf32>
    %c0_i32_6 = arith.constant 0 : i32
    %22 = arith.cmpi eq, %arg1, %c0_i32_6 : i32
    %23 = arith.extui %22 : i1 to i32
    %c0_i32_7 = arith.constant 0 : i32
    %24 = arith.cmpi ne, %23, %c0_i32_7 : i32
    scf.if %24 {
      %cst_18 = arith.constant 0.000000e+00 : f32
      %34 = vector.broadcast %cst_18 : f32 to vector<1x128xf32>
      %c0_19 = arith.constant 0 : index
      %c0_20 = arith.constant 0 : index
      %35 = vector.load %arg5[%c0_19, %c0_20] : memref<1x128xf32, #tpu.memory_space<vmem>>, vector<1x128xf32>
      tpu.vector_store %arg5[%c0_19, %c0_20], %34 {strides = array<i32>} : memref<1x128xf32, #tpu.memory_space<vmem>>, vector<1x128xf32>,
      %cst_21 = arith.constant 0.000000e+00 : f32
      %36 = vector.broadcast %cst_21 : f32 to vector<1x128xf32>
      %c0_22 = arith.constant 0 : index
      %c0_23 = arith.constant 0 : index
      %37 = vector.load %arg6[%c0_22, %c0_23] : memref<1x128xf32, #tpu.memory_space<vmem>>, vector<1x128xf32>
      tpu.vector_store %arg6[%c0_22, %c0_23], %36 {strides = array<i32>} : memref<1x128xf32, #tpu.memory_space<vmem>>, vector<1x128xf32>,
      %38 = arith.extui %3 : vector<8x1xi1> to vector<8x1xi32>
      %39 = arith.sitofp %38 : vector<8x1xi32> to vector<8x1xf32>
      %40 = vector.shape_cast %39 : vector<8x1xf32> to vector<1x8x1xf32>
      %cst_24 = arith.constant dense<0.000000e+00> : vector<1xf32>
      %41 = vector.multi_reduction <add>, %40, %cst_24 [1, 2] : vector<1x8x1xf32> to vector<1xf32>
      %42 = vector.shape_cast %41 : vector<1xf32> to vector<1x1x1xf32>
      %43 = vector.extract %42[0, 0, 0] : f32 from vector<1x1x1xf32>
      %44 = vector.broadcast %43 : f32 to vector<1x1xf32>
      %c0_25 = arith.constant 0 : index
      %c0_26 = arith.constant 0 : index
      %45 = vector.load %arg7[%c0_25, %c0_26] : memref<1x1xf32, #tpu.memory_space<vmem>>, vector<1x1xf32>
      tpu.vector_store %arg7[%c0_25, %c0_26], %44 {strides = array<i32>} : memref<1x1xf32, #tpu.memory_space<vmem>>, vector<1x1xf32>,
    } else {
    }
    %c0_8 = arith.constant 0 : index
    %c0_9 = arith.constant 0 : index
    %25 = vector.load %arg5[%c0_8, %c0_9] : memref<1x128xf32, #tpu.memory_space<vmem>>, vector<1x128xf32>
    %26 = arith.addf %25, %19 : vector<1x128xf32>
    %c0_10 = arith.constant 0 : index
    %c0_11 = arith.constant 0 : index
    %27 = vector.load %arg5[%c0_10, %c0_11] : memref<1x128xf32, #tpu.memory_space<vmem>>, vector<1x128xf32>
    tpu.vector_store %arg5[%c0_10, %c0_11], %26 {strides = array<i32>} : memref<1x128xf32, #tpu.memory_space<vmem>>, vector<1x128xf32>,
    %c0_12 = arith.constant 0 : index
    %c0_13 = arith.constant 0 : index
    %28 = vector.load %arg6[%c0_12, %c0_13] : memref<1x128xf32, #tpu.memory_space<vmem>>, vector<1x128xf32>
    %29 = arith.addf %28, %21 : vector<1x128xf32>
    %c0_14 = arith.constant 0 : index
    %c0_15 = arith.constant 0 : index
    %30 = vector.load %arg6[%c0_14, %c0_15] : memref<1x128xf32, #tpu.memory_space<vmem>>, vector<1x128xf32>
    tpu.vector_store %arg6[%c0_14, %c0_15], %29 {strides = array<i32>} : memref<1x128xf32, #tpu.memory_space<vmem>>, vector<1x128xf32>,
    %c0_i32_16 = arith.constant 0 : i32
    %31 = arith.cmpi eq, %arg1, %c0_i32_16 : i32
    %32 = arith.extui %31 : i1 to i32
    %c0_i32_17 = arith.constant 0 : i32
    %33 = arith.cmpi ne, %32, %c0_i32_17 : i32
    scf.if %33 {
      %c0_18 = arith.constant 0 : index
      %c0_19 = arith.constant 0 : index
      %34 = vector.load %arg5[%c0_18, %c0_19] : memref<1x128xf32, #tpu.memory_space<vmem>>, vector<1x128xf32>
      %35 = vector.shape_cast %34 : vector<1x128xf32> to vector<1x1x128xf32>
      %cst_20 = arith.constant dense<0.000000e+00> : vector<1xf32>
      %36 = vector.multi_reduction <add>, %35, %cst_20 [1, 2] : vector<1x1x128xf32> to vector<1xf32>
      %37 = vector.shape_cast %36 : vector<1xf32> to vector<1x1x1xf32>
      %38 = vector.extract %37[0, 0, 0] : f32 from vector<1x1x1xf32>
      %c0_21 = arith.constant 0 : index
      %c0_22 = arith.constant 0 : index
      %39 = vector.load %arg6[%c0_21, %c0_22] : memref<1x128xf32, #tpu.memory_space<vmem>>, vector<1x128xf32>
      %40 = vector.shape_cast %39 : vector<1x128xf32> to vector<1x1x128xf32>
      %cst_23 = arith.constant dense<0.000000e+00> : vector<1xf32>
      %41 = vector.multi_reduction <add>, %40, %cst_23 [1, 2] : vector<1x1x128xf32> to vector<1xf32>
      %42 = vector.shape_cast %41 : vector<1xf32> to vector<1x1x1xf32>
      %43 = vector.extract %42[0, 0, 0] : f32 from vector<1x1x1xf32>
      %c0_24 = arith.constant 0 : index
      %c0_25 = arith.constant 0 : index
      %44 = vector.load %arg7[%c0_24, %c0_25] : memref<1x1xf32, #tpu.memory_space<vmem>>, vector<1x1xf32>
      %45 = vector.shape_cast %44 : vector<1x1xf32> to vector<1x1x1xf32>
      %cst_26 = arith.constant dense<0.000000e+00> : vector<1xf32>
      %46 = vector.multi_reduction <add>, %45, %cst_26 [1, 2] : vector<1x1x1xf32> to vector<1xf32>
      %47 = vector.shape_cast %46 : vector<1xf32> to vector<1x1x1xf32>
      %48 = vector.extract %47[0, 0, 0] : f32 from vector<1x1x1xf32>
      %49 = tpu.iota {dimensions = array<i32: 1>} : vector<8x128xi32>
      %c0_i32_27 = arith.constant 0 : i32
      %50 = vector.broadcast %c0_i32_27 : i32 to vector<8x128xi32>
      %51 = arith.cmpi eq, %49, %50 : vector<8x128xi32>
      %c1_i32 = arith.constant 1 : i32
      %52 = vector.broadcast %c1_i32 : i32 to vector<8x128xi32>
      %53 = arith.cmpi eq, %49, %52 : vector<8x128xi32>
      %c2_i32 = arith.constant 2 : i32
      %54 = vector.broadcast %c2_i32 : i32 to vector<8x128xi32>
      %55 = arith.cmpi eq, %49, %54 : vector<8x128xi32>
      %cst_28 = arith.constant 0.000000e+00 : f32
      %56 = vector.broadcast %43 : f32 to vector<8x128xf32>
      %57 = vector.broadcast %cst_28 : f32 to vector<8x128xf32>
      %58 = arith.select %55, %56, %57 : vector<8x128xi1>, vector<8x128xf32>
      %59 = vector.broadcast %48 : f32 to vector<8x128xf32>
      %60 = arith.select %53, %59, %58 : vector<8x128xi1>, vector<8x128xf32>
      %61 = vector.broadcast %38 : f32 to vector<8x128xf32>
      %62 = arith.select %51, %61, %60 : vector<8x128xi1>, vector<8x128xf32>
      %c0_29 = arith.constant 0 : index
      %c0_30 = arith.constant 0 : index
      %63 = vector.load %arg4[%c0_29, %c0_30] : memref<8x128xf32, #tpu.memory_space<vmem>>, vector<8x128xf32>
      tpu.vector_store %arg4[%c0_29, %c0_30], %62 {strides = array<i32>} : memref<8x128xf32, #tpu.memory_space<vmem>>, vector<8x128xf32>,
    } else {
    }
    return
  }
  func.func @transform_0(%arg0: i32, %arg1: i32) -> (i32, i32) {
    %c0_i32 = arith.constant 0 : i32
    return %arg0, %arg1 : i32, i32
  }
  func.func @transform_1(%arg0: i32, %arg1: i32) -> (i32, i32) {
    %c0_i32 = arith.constant 0 : i32
    %c0_i32_0 = arith.constant 0 : i32
    return %arg0, %c0_i32 : i32, i32
  }
  func.func @transform_2(%arg0: i32, %arg1: i32) -> (i32, i32) {
    %c0_i32 = arith.constant 0 : i32
    %c0_i32_0 = arith.constant 0 : i32
    return %arg0, %c0_i32 : i32, i32
  }
}

</mosaic_0001>

<llo_original>
// kernel: tpu_custom_call.1
$region0: #{tpu_custom_call.1}
  #allocation0 [shape = 'u32[]', space=smem, size = 0x4, offset = 0x4, fixed_abs, tag = 'smem constant byte address 0x4 - core index']
  #allocation1 [shape = 'u32[144,128]{1,0:T(1,128)}', space=vmem, size = 0x12000, scoped, tag = 'internal scratch']
  #allocation2 [shape = 'f32[1,128]{1,0:T(1,128)}', space=vmem, size = 0x200, scoped, tag = 'scratch operand']
  #allocation3 [shape = 'f32[1,128]{1,0:T(1,128)}', space=vmem, size = 0x200, scoped, tag = 'scratch operand']
  #allocation4 [shape = 'f32[1,1]{1,0:T(1,128)}', space=vmem, size = 0x200, scoped, tag = 'scratch operand']
  %s0 = inlined_call_operand.vmem [shape: f32[8,128], index: 0, kind: input, shape index: {}]
  %s1 = inlined_call_operand.vmem [shape: s32[8,1], index: 1, kind: input, shape index: {}]
  %s2 = inlined_call_operand.hbm [shape: f32[8,128], index: 2, kind: output, shape index: {}]
  %s3 = sld [smem:[#allocation0]]
  $region26: #{tpu_custom_call.1} parent=0
    _
  %s5 = ssub.s32 1, %s3
  %s6 = scalar_select 0, %s5, %s3
  $region1: #{tpu_custom_call.1} parent=0
    #allocation5 [shape = 'u8[4096]{0}', space=vmem, size = 0x1000, scoped, tag = 'output window, operand 0, single buffered']
    #allocation6 [shape = 's32[1]{0}', space=sflag, size = 0x4, scoped, tag = 'scoped memory for tpu_custom_call.1']
    %7 = vsyncpa [#allocation6], 0
    // Predicated region
    $region2: #{tpu_custom_call.1} parent=1 // pred_check
      _
    $region3: #{tpu_custom_call.1} parent=1 // pred_check_branch
      %9 = sbr.rel (0) target = $region5
    $region4: #{tpu_custom_call.1} parent=1 // pred_region
      _
    $region5: #{tpu_custom_call.1} parent=1 // pred_fallthru
      _
    // Predicated region
    $region6: #{tpu_custom_call.1} parent=1 // pred_check
      _
    $region7: #{tpu_custom_call.1} parent=1 // pred_check_branch
      %11 = sbr.rel (0) target = $region9
    $region8: #{tpu_custom_call.1} parent=1 // pred_region
      _
    $region9: #{tpu_custom_call.1} parent=1 // pred_fallthru
      _
    %v12 = vld [vmem:[%s0] sm:$0xff]
    %v13 = vld [vmem:[%s1] sm:$0xff]
    %vm14 = vcmp.ge.s32.totalorder %v13, 0
    %v15 = vlaneseq
    %v16 = vand.u32 %v15, 127
    %v17 = vsel %vm14, 1, 0
    %18 = vset.pattern.permute.xlu0 0
    %19 = vperm.xlu0 %18, %v17
    %v20 = vpop.permute.xlu0 %19
    %vm21 = vcmp.eq.s32.totalorder %v20, 1
    %v22 = vsel %vm21, %v12, 0.0
    %s23 = smul.u32 0, 128
    %v24 = vstv %s23
    %v25 = vsub.s32 %v13, %v24
    %26 = vset.pattern.permute.xlu0 0
    %27 = vperm.xlu0 %26, %v25
    %v28 = vpop.permute.xlu0 %27
    %vm29 = vcmp.eq.s32.totalorder %v16, %v28
    %v30 = vsel %vm29, %v22, 0.0
    %v31 = vmul.f32 %v22, 1.442695
    %v32 = vpow.pop %v31
    %v33 = vmul.f32 %v32, %v22
    %v34 = vrot.slane %v30, 4
    %v35 = vadd.f32 %v30, %v34
    %v36 = vrot.slane %v35, 2
    %v37 = vadd.f32 %v35, %v36
    %v38 = vrot.slane %v37, 1
    %v39 = vadd.f32 %v37, %v38
    %v40 = vrot.slane %v33, 4
    %v41 = vadd.f32 %v33, %v40
    %v42 = vrot.slane %v41, 2
    %v43 = vadd.f32 %v41, %v42
    %v44 = vrot.slane %v43, 1
    %v45 = vadd.f32 %v43, %v44
    %p46 = scmp.eq.s32.totalorder 0, 0
    // Predicated region
    $region10: #{tpu_custom_call.1} parent=1 // pred_check
      %p47 = pneg %p46
    $region11: #{tpu_custom_call.1} parent=1 // pred_check_branch
      %49 = sbr.rel (%p47) target = $region13
    $region12: #{tpu_custom_call.1} parent=1 // pred_region
      %50 = vst [vmem:[#allocation2] sm:$0x1] 0.0
      %51 = vst [vmem:[#allocation3] sm:$0x1] 0.0
      %v52 = vcvt.s32.f32 %v17
      %vm53 = vcmask 7168
      %v54 = vsel %vm53, %v52, 0.0
      %55 = vadd.xlane.f32.xlu0 %v54
      %v56 = vpop.xlane.xlu0 %55
      %v57 = vrot.slane %v56, 4
      %v58 = vadd.f32 %v56, %v57
      %v59 = vrot.slane %v58, 2
      %v60 = vadd.f32 %v58, %v59
      %v61 = vrot.slane %v60, 1
      %v62 = vadd.f32 %v60, %v61
      %s63 = vtos %v62
      %v64 = vstv %s63
      %vm65 = vcmask 0
      %66 = vst.msk [vmem:[#allocation4] sm:$0x1] %vm65, %v64
    $region13: #{tpu_custom_call.1} parent=1 // pred_fallthru
      _
    %v67 = vld [vmem:[#allocation2] sm:$0x1]
    %v68 = vadd.f32 %v67, %v39
    %69 = vst [vmem:[#allocation2] sm:$0x1] %v68
    %v70 = vld [vmem:[#allocation3] sm:$0x1]
    %v71 = vadd.f32 %v70, %v45
    %72 = vst [vmem:[#allocation3] sm:$0x1] %v71
    // Predicated region
    $region14: #{tpu_custom_call.1} parent=1 // pred_check
      %p73 = pneg %p46
    $region15: #{tpu_custom_call.1} parent=1 // pred_check_branch
      %75 = sbr.rel (%p73) target = $region17
    $region16: #{tpu_custom_call.1} parent=1 // pred_region
      %v76 = vld [vmem:[#allocation2] sm:$0x1]
      %vm77 = vcmask 1040384
      %v78 = vsel %vm77, %v76, 0.0
      %79 = vadd.xlane.f32.xlu0 %v78
      %v80 = vpop.xlane.xlu0 %79
      %v81 = vrot.slane %v80, 4
      %v82 = vadd.f32 %v80, %v81
      %v83 = vrot.slane %v82, 2
      %v84 = vadd.f32 %v82, %v83
      %v85 = vrot.slane %v84, 1
      %v86 = vadd.f32 %v84, %v85
      %s87 = vtos %v86
      %v88 = vld [vmem:[#allocation3] sm:$0x1]
      %v89 = vsel %vm77, %v88, 0.0
      %90 = vadd.xlane.f32.xlu0 %v89
      %v91 = vpop.xlane.xlu0 %90
      %v92 = vrot.slane %v91, 4
      %v93 = vadd.f32 %v91, %v92
      %v94 = vrot.slane %v93, 2
      %v95 = vadd.f32 %v93, %v94
      %v96 = vrot.slane %v95, 1
      %v97 = vadd.f32 %v95, %v96
      %s98 = vtos %v97
      %v99 = vld [vmem:[#allocation4] sm:$0x1]
      %v100 = vadd.f32 %v99, 0.0
      %s101 = vtos %v100
      %vm102 = vcmp.eq.s32.totalorder %v16, 0
      %vm103 = vcmp.eq.s32.totalorder %v16, 1
      %vm104 = vcmp.eq.s32.totalorder %v16, 2
      %v105 = vstv %s98
      %v106 = vsel %vm104, %v105, 0.0
      %v107 = vstv %s101
      %v108 = vsel %vm103, %v107, %v106
      %v109 = vstv %s87
      %v110 = vsel %vm102, %v109, %v108
      %111 = vst [vmem:[#allocation5] sm:$0xff] %v110
    $region17: #{tpu_custom_call.1} parent=1 // pred_fallthru
      _
    // Predicated region
    $region18: #{tpu_custom_call.1} parent=1 // pred_check
      _
    $region19: #{tpu_custom_call.1} parent=1 // pred_check_branch
      %113 = sbr.rel (0) target = $region21
    $region20: #{tpu_custom_call.1} parent=1 // pred_region
      %s115 = ssub.s32 128, 128
      %116 = vsyncadd [#allocation6], %s115
      %s118 = sshll.u32 [#allocation5], 4
      %s119 = int_to_ptr.vmem [resolvable:$true] %s118
      %121 = dma.vmem_to_hbm [thread:$0]  %s119, 128, %s2, [#allocation6]
    $region21: #{tpu_custom_call.1} parent=1 // pred_fallthru
      _
    // Predicated region
    $region22: #{tpu_custom_call.1} parent=1 // pred_check
      _
    $region23: #{tpu_custom_call.1} parent=1 // pred_check_branch
      %123 = sbr.rel (0) target = $region25
    $region24: #{tpu_custom_call.1} parent=1 // pred_region
      %124 = dma.done [#allocation6], 128
    $region25: #{tpu_custom_call.1} parent=1 // pred_fallthru
      _
    %125 = vsyncpa [#allocation6], 1

</llo_original>
